<compile_context>
chip_gen: v7x
topology: tpu7x:2x2x1
jax: 0.10.0
libtpu: 0.0.40
codegen_flags: <defaults>
</compile_context>

<pallas_src>
import functools

import jax
import jax.numpy as jnp
from jax.experimental import pallas as pl
from jax.experimental.pallas import tpu as pltpu


_TARGET_BLOCK_BYTES = 4 * 1024 * 1024   # ~4 MiB per operand per grid step
_VMEM_LIMIT_BYTES = 48 * 1024 * 1024    # 3 streams x 2 buffers x 4 MiB + slack
_LANE_CHOICES = (512, 256, 128)         # lane-dense widths (multiples of 128)


def _binary_clip_kernel(a_ref, b_ref, o_ref, *, binary_op, clip_fn, b_is_scalar):
    a = a_ref[...]
    # Size-1 operand stays (1, 1) in VMEM and is broadcast here (no HBM copy).
    b = b_ref[...]
    z = a + b if binary_op == "add" else a * b
    o_ref[...] = clip_fn(z).astype(o_ref.dtype)


def _sublane_multiple(itemsize):
    # f32 -> 8 sublanes per vreg, bf16 -> 16, int8/fp8 -> 32 (sublane packing).
    return max(8, 32 // int(itemsize))


def binary_clip(a, b, *, binary_op="add", clip_fn=None):
    """BinaryClip forward: clip_fn(binary_op(a, b)), fused in one Pallas pass."""
    assert binary_op in ("add", "mul"), binary_op
    if clip_fn is None:
        # Weak-typed integer bounds keep the input dtype (matches torch.clamp
        # for both float and integer inputs); ReLU6-style clip by default.
        clip_fn = lambda x: jnp.clip(x, 0, 6)

    a = jnp.asarray(a)
    b = jnp.asarray(b)
    dtype = jnp.result_type(a.dtype, b.dtype)
    result_shape = jnp.broadcast_shapes(a.shape, b.shape)

    # Degenerate scalar-scalar case: nothing to stream.
    if a.size == 1 and b.size == 1:
        az = a.astype(dtype)
        bz = b.astype(dtype)
        z = az + bz if binary_op == "add" else az * bz
        return jnp.broadcast_to(clip_fn(z).astype(dtype), result_shape)

    # add / mul are commutative: make `a` the big tensor, `b` the small one.
    if a.size == 1:
        a, b = b, a
    b_is_scalar = (b.size == 1)

    if not b_is_scalar and a.shape != b.shape:
        # TODO(synk): general broadcast (e.g. per-channel bias) still
        # materializes a full-size copy of the smaller operand in HBM; it could
        # be fed at natural size with a repeating BlockSpec + in-kernel
        # broadcast instead.
        a, b = jnp.broadcast_arrays(a, b)

    a = a.astype(dtype)
    b = b.astype(dtype)
    total = a.size
    itemsize = jnp.dtype(dtype).itemsize
    sub = _sublane_multiple(itemsize)

    # Pick the widest lane-dense layout that divides the element count so the
    # flatten/reshape is zero-copy (no jnp.pad, no output slice).
    lane = None
    for cand in _LANE_CHOICES:
        if total % cand == 0:
            lane = cand
            break
    pad = 0
    if lane is None:
        # Rare ragged tail (element count not a multiple of 128): pad.
        # TODO(synk): mask the tail in-kernel instead of padding (the pad costs
        # an extra HBM pass over each input).
        lane = 128
        pad = (-total) % lane

    af = a.reshape(-1)
    bf = b.reshape(1, 1) if b_is_scalar else b.reshape(-1)
    if pad:
        af = jnp.pad(af, (0, pad))
        if not b_is_scalar:
            bf = jnp.pad(bf, (0, pad))
    rows = (total + pad) // lane
    a2 = af.reshape(rows, lane)
    b2 = bf if b_is_scalar else bf.reshape(rows, lane)

    # Dtype-aware block: ~4 MiB per operand per grid step (2048 rows for f32 at
    # lane=512), rounded to the sublane-packing multiple.  Also guarantee >=2
    # grid steps whenever possible so the "parallel" axis can shard across both
    # TensorCores on v7x.
    budget_rows = max(sub, (_TARGET_BLOCK_BYTES // (lane * itemsize)) // sub * sub)
    if rows < 2 * sub:
        block_rows = rows                               # full extent (tiny input)
    else:
        half_rows = pl.cdiv(pl.cdiv(rows, 2), sub) * sub
        block_rows = min(budget_rows, half_rows)
    grid = (pl.cdiv(rows, block_rows),)

    if b_is_scalar:
        b_spec = pl.BlockSpec((1, 1), lambda i: (0, 0))
    else:
        b_spec = pl.BlockSpec((block_rows, lane), lambda i: (i, 0))

    kernel = functools.partial(
        _binary_clip_kernel,
        binary_op=binary_op, clip_fn=clip_fn, b_is_scalar=b_is_scalar)

    n_streams = 2 if b_is_scalar else 3
    out2 = pl.pallas_call(
        kernel,
        out_shape=jax.ShapeDtypeStruct((rows, lane), dtype),
        grid_spec=pltpu.PrefetchScalarGridSpec(
            num_scalar_prefetch=0,
            grid=grid,
            in_specs=[
                pl.BlockSpec((block_rows, lane), lambda i: (i, 0)),
                b_spec,
            ],
            out_specs=pl.BlockSpec((block_rows, lane), lambda i: (i, 0)),
        ),
        compiler_params=pltpu.CompilerParams(
            dimension_semantics=("parallel",),
            vmem_limit_bytes=_VMEM_LIMIT_BYTES,
        ),
        cost_estimate=pl.CostEstimate(
            flops=3 * total,  # 1 binary op + ~2 compares per element
            transcendentals=0,
            bytes_accessed=n_streams * total * itemsize,
        ),
    )(a2, b2)

    out_flat = out2.reshape(-1)
    if pad:
        out_flat = out_flat[:total]
    return out_flat.reshape(result_shape)


if __name__ == "__main__":
    key = jax.random.PRNGKey(0)
    ka, kb, kc, kd = jax.random.split(key, 4)

    # Small NCHW-style inputs consistent with the module's intended use.
    a = jax.random.normal(ka, (2, 4, 16, 16), dtype=jnp.float32) * 4.0
    b = jax.random.normal(kb, (2, 4, 16, 16), dtype=jnp.float32) * 4.0

    out = jax.block_until_ready(binary_clip(a, b, binary_op="add"))
    ref = jnp.clip(a + b, 0.0, 6.0)
    assert out.shape == ref.shape, (out.shape, ref.shape)
    assert out.dtype == ref.dtype, (out.dtype, ref.dtype)
    assert jnp.allclose(out, ref), "mismatch vs reference (add + clip)"

    out_mul = jax.block_until_ready(binary_clip(a, b, binary_op="mul"))
    ref_mul = jnp.clip(a * b, 0.0, 6.0)
    assert jnp.allclose(out_mul, ref_mul), "mismatch vs reference (mul + clip)"

    # Tensor + scalar: scalar is never broadcast through HBM.
    out_sc = jax.block_until_ready(
        binary_clip(a, jnp.float32(1.5), binary_op="add"))
    ref_sc = jnp.clip(a + 1.5, 0.0, 6.0)
    assert jnp.allclose(out_sc, ref_sc), "mismatch vs reference (tensor + scalar)"

    # Slightly larger input so the grid has >= 2 steps (v7x dual-TC path).
    c = jax.random.normal(kc, (4, 8, 16, 16), dtype=jnp.float32) * 4.0
    d = jax.random.normal(kd, (4, 8, 16, 16), dtype=jnp.float32) * 4.0
    out_big = jax.block_until_ready(binary_clip(c, d, binary_op="add"))
    assert jnp.allclose(out_big, jnp.clip(c + d, 0.0, 6.0)), "mismatch (multi-block)"

    # Ragged element count (not a multiple of 128) exercises the pad fallback.
    e = jax.random.normal(kc, (3, 5, 7), dtype=jnp.float32) * 4.0
    f = jax.random.normal(kd, (3, 5, 7), dtype=jnp.float32) * 4.0
    out_rag = jax.block_until_ready(binary_clip(e, f, binary_op="mul"))
    assert jnp.allclose(out_rag, jnp.clip(e * f, 0.0, 6.0)), "mismatch (ragged)"

    print("KERNEL_OK")
</pallas_src>

<mosaic_0001>
module attributes {stable_mosaic.version = 11 : i64} {
  func.func @_binary_clip_kernel(%arg0: i32, %arg1: memref<4x512xf32, #tpu.memory_space<vmem>>, %arg2: memref<4x512xf32, #tpu.memory_space<vmem>>, %arg3: memref<4x512xf32, #tpu.memory_space<vmem>>) attributes {dimension_semantics = [#tpu.dimension_semantics<parallel>], iteration_bounds = array<i64: 1>, scalar_prefetch = 0 : i64, scratch_operands = 0 : i64, tpu.core_type = #tpu.core_type<tc>, window_params = [{transform_indices = @transform_0, window_bounds = array<i64: 4, 512>}, {transform_indices = @transform_1, window_bounds = array<i64: 4, 512>}, {transform_indices = @transform_2, window_bounds = array<i64: 4, 512>}]} {
    %c0 = arith.constant 0 : index
    %c0_0 = arith.constant 0 : index
    %0 = vector.load %arg1[%c0, %c0_0] : memref<4x512xf32, #tpu.memory_space<vmem>>, vector<4x512xf32>
    %c0_1 = arith.constant 0 : index
    %c0_2 = arith.constant 0 : index
    %1 = vector.load %arg2[%c0_1, %c0_2] : memref<4x512xf32, #tpu.memory_space<vmem>>, vector<4x512xf32>
    %2 = arith.addf %0, %1 : vector<4x512xf32>
    %c0_i32 = arith.constant 0 : i32
    %c6_i32 = arith.constant 6 : i32
    %3 = arith.sitofp %c0_i32 : i32 to f32
    %4 = vector.broadcast %3 : f32 to vector<4x512xf32>
    %5 = arith.maximumf %4, %2 : vector<4x512xf32>
    %6 = arith.sitofp %c6_i32 : i32 to f32
    %7 = vector.broadcast %6 : f32 to vector<4x512xf32>
    %8 = arith.minimumf %7, %5 : vector<4x512xf32>
    %c0_3 = arith.constant 0 : index
    %c0_4 = arith.constant 0 : index
    %9 = vector.load %arg3[%c0_3, %c0_4] : memref<4x512xf32, #tpu.memory_space<vmem>>, vector<4x512xf32>
    tpu.vector_store %arg3[%c0_3, %c0_4], %8 {strides = array<i32>} : memref<4x512xf32, #tpu.memory_space<vmem>>, vector<4x512xf32>,
    return
  }
  func.func @transform_0(%arg0: i32) -> (i32, i32) {
    %c0_i32 = arith.constant 0 : i32
    %c0_i32_0 = arith.constant 0 : i32
    return %arg0, %c0_i32 : i32, i32
  }
  func.func @transform_1(%arg0: i32) -> (i32, i32) {
    %c0_i32 = arith.constant 0 : i32
    %c0_i32_0 = arith.constant 0 : i32
    return %arg0, %c0_i32 : i32, i32
  }
  func.func @transform_2(%arg0: i32) -> (i32, i32) {
    %c0_i32 = arith.constant 0 : i32
    %c0_i32_0 = arith.constant 0 : i32
    return %arg0, %c0_i32 : i32, i32
  }
}

</mosaic_0001>

<llo_original>
// kernel: tpu_custom_call.1
$region0: #{tpu_custom_call.1}
  #allocation0 [shape = 'u32[]', space=smem, size = 0x4, offset = 0x4, fixed_abs, tag = 'smem constant byte address 0x4 - core index']
  #allocation1 [shape = 'u32[144,128]{1,0:T(1,128)}', space=vmem, size = 0x12000, scoped, tag = 'internal scratch']
  %s0 = inlined_call_operand.hbm [shape: f32[4,512], index: 0, kind: input, shape index: {}]
  %s1 = inlined_call_operand.hbm [shape: f32[4,512], index: 1, kind: input, shape index: {}]
  %s2 = inlined_call_operand.hbm [shape: f32[4,512], index: 2, kind: output, shape index: {}]
  %s3 = sld [smem:[#allocation0]]
  $region26: #{tpu_custom_call.1} parent=0
    _
  %s5 = ssub.s32 1, %s3
  %s6 = scalar_select 0, %s5, %s3
  $region1: #{tpu_custom_call.1} parent=0
    #allocation2 [shape = 'u8[8192]{0}', space=vmem, size = 0x2000, scoped, tag = 'input window, operand 0, single buffered']
    #allocation3 [shape = 's32[1]{0}', space=sflag, size = 0x4, scoped, tag = 'scoped memory for tpu_custom_call.1']
    #allocation4 [shape = 's32[1]{0}', space=sflag, size = 0x4, scoped, tag = 'scoped memory for tpu_custom_call.1']
    #allocation5 [shape = 'u8[8192]{0}', space=vmem, size = 0x2000, scoped, tag = 'input window, operand 1, single buffered']
    #allocation6 [shape = 's32[1]{0}', space=sflag, size = 0x4, scoped, tag = 'scoped memory for tpu_custom_call.1']
    #allocation7 [shape = 'u8[8192]{0}', space=vmem, size = 0x2000, scoped, tag = 'output window, operand 0, single buffered']
    %7 = vsyncpa [#allocation3], 0
    %8 = vsyncpa [#allocation6], 0
    %9 = vsyncpa [#allocation4], 0
    // Predicated region
    $region2: #{tpu_custom_call.1} parent=1 // pred_check
      _
    $region3: #{tpu_custom_call.1} parent=1 // pred_check_branch
      %11 = sbr.rel (0) target = $region5
    $region4: #{tpu_custom_call.1} parent=1 // pred_region
      %s13 = ssub.s32 256, 256
      %14 = vsyncadd [#allocation3], %s13
      %s16 = sshll.u32 [#allocation2], 4
      %s17 = int_to_ptr.vmem [resolvable:$true] %s16
      %19 = dma.hbm_to_vmem [thread:$0]  %s0, 256, %s17, [#allocation3]
    $region5: #{tpu_custom_call.1} parent=1 // pred_fallthru
      _
    // Predicated region
    $region6: #{tpu_custom_call.1} parent=1 // pred_check
      _
    $region7: #{tpu_custom_call.1} parent=1 // pred_check_branch
      %21 = sbr.rel (0) target = $region9
    $region8: #{tpu_custom_call.1} parent=1 // pred_region
      %s23 = ssub.s32 256, 256
      %24 = vsyncadd [#allocation6], %s23
      %s26 = sshll.u32 [#allocation5], 4
      %s27 = int_to_ptr.vmem [resolvable:$true] %s26
      %29 = dma.hbm_to_vmem [thread:$0]  %s1, 256, %s27, [#allocation6]
    $region9: #{tpu_custom_call.1} parent=1 // pred_fallthru
      _
    // Predicated region
    $region10: #{tpu_custom_call.1} parent=1 // pred_check
      _
    $region11: #{tpu_custom_call.1} parent=1 // pred_check_branch
      %31 = sbr.rel (0) target = $region13
    $region12: #{tpu_custom_call.1} parent=1 // pred_region
      %32 = dma.done [#allocation3], 256
    $region13: #{tpu_custom_call.1} parent=1 // pred_fallthru
      _
    // Predicated region
    $region14: #{tpu_custom_call.1} parent=1 // pred_check
      _
    $region15: #{tpu_custom_call.1} parent=1 // pred_check_branch
      %34 = sbr.rel (0) target = $region17
    $region16: #{tpu_custom_call.1} parent=1 // pred_region
      %35 = dma.done [#allocation6], 256
    $region17: #{tpu_custom_call.1} parent=1 // pred_fallthru
      _
    %v36 = vld [vmem:[#allocation2] sm:$0xff]
    %v37 = vld [vmem:[#allocation2 + $0x8] sm:$0xff]
    %v38 = vld [vmem:[#allocation5] sm:$0xff]
    %v39 = vld [vmem:[#allocation5 + $0x8] sm:$0xff]
    %v40 = vadd.f32 %v36, %v38
    %v41 = vadd.f32 %v37, %v39
    %v42 = vmax.f32 %v40, 0.0
    %v43 = vmax.f32 %v41, 0.0
    %v44 = vmin.f32 %v42, 6.0
    %v45 = vmin.f32 %v43, 6.0
    %46 = vst [vmem:[#allocation7] sm:$0xff] %v44
    %47 = vst [vmem:[#allocation7 + $0x8] sm:$0xff] %v45
    // Predicated region
    $region18: #{tpu_custom_call.1} parent=1 // pred_check
      _
    $region19: #{tpu_custom_call.1} parent=1 // pred_check_branch
      %49 = sbr.rel (0) target = $region21
    $region20: #{tpu_custom_call.1} parent=1 // pred_region
      %s51 = ssub.s32 256, 256
      %52 = vsyncadd [#allocation4], %s51
      %s54 = sshll.u32 [#allocation7], 4
      %s55 = int_to_ptr.vmem [resolvable:$true] %s54
      %57 = dma.vmem_to_hbm [thread:$0]  %s55, 256, %s2, [#allocation4]
    $region21: #{tpu_custom_call.1} parent=1 // pred_fallthru
      _
    // Predicated region
    $region22: #{tpu_custom_call.1} parent=1 // pred_check
      _
    $region23: #{tpu_custom_call.1} parent=1 // pred_check_branch
      %59 = sbr.rel (0) target = $region25
    $region24: #{tpu_custom_call.1} parent=1 // pred_region
      %60 = dma.done [#allocation4], 256
    $region25: #{tpu_custom_call.1} parent=1 // pred_fallthru
      _
    %61 = vsyncpa [#allocation3], 1
    %62 = vsyncpa [#allocation6], 1
    %63 = vsyncpa [#allocation4], 1

</llo_original>
